<compile_context>
chip_gen: v6e
topology: v6e:2x2x1
jax: 0.10.0
libtpu: 0.0.40
codegen_flags: <defaults>
</compile_context>

<pallas_src>
import functools

import jax
import jax.numpy as jnp
from jax.experimental import pallas as pl
from jax.experimental.pallas import tpu as pltpu

# Separable Gaussian taps (torch: k = [0.05, 0.25, 0.4, 0.25, 0.05]).
_K1 = (0.05, 0.25, 0.4, 0.25, 0.05)


def _round_up(v, m):
    return ((v + m - 1) // m) * m


def _shift_rows_clamp(x, d, h):
    """y[i, :] = x[clamp(i + d, 0, h - 1), :] for rows i < h (rows >= h: don't care).

    x is an (Hb, Wb) block whose rows >= h hold unspecified data; the clamp uses
    the true image height h, so garbage rows never feed valid outputs.
    """
    hb = x.shape[0]
    y = pltpu.roll(x, shift=(-d) % hb, axis=0)            # XLU sublane rotate
    row = jax.lax.broadcasted_iota(jnp.int32, x.shape, 0)
    if d > 0:
        return jnp.where(row >= h - d, x[h - 1:h, :], y)  # replicate bottom edge
    return jnp.where(row < -d, x[0:1, :], y)              # replicate top edge


def _shift_cols_clamp(x, d, w):
    """y[:, j] = x[:, clamp(j + d, 0, w - 1)] for cols j < w (cols >= w: don't care)."""
    wb = x.shape[1]
    y = pltpu.roll(x, shift=(-d) % wb, axis=1)            # XLU lane rotate
    col = jax.lax.broadcasted_iota(jnp.int32, x.shape, 1)
    if d > 0:
        return jnp.where(col >= w - d, x[:, w - 1:w], y)  # replicate right edge
    return jnp.where(col < -d, x[:, 0:1], y)              # replicate left edge


def _blur5(x, shift_fn, n):
    """Symmetric 5-tap blur along one axis with clamped (replicate) edges."""
    c0, c1, c2 = _K1[2], _K1[1], _K1[0]
    # Independent partial sums (symmetric tap pairs) -> short dependence chain.
    p1 = shift_fn(x, -1, n) + shift_fn(x, 1, n)
    p2 = shift_fn(x, -2, n) + shift_fn(x, 2, n)
    return c0 * x + (c1 * p1 + c2 * p2)


def _gauss_kernel(x_ref, o_ref, *, h, w):
    # x_ref / o_ref: (1, 1, Hb, Wb) blocks; only [:h, :w] is valid image data.
    x = x_ref[0, 0].astype(jnp.float32)
    t = _blur5(x, _shift_rows_clamp, h)   # vertical pass  (sublane shifts)
    y = _blur5(t, _shift_cols_clamp, w)   # horizontal pass (lane shifts)
    o_ref[0, 0] = y.astype(o_ref.dtype)


def gauss_filt(x):
    """x: (N, 1, H, W) -> (N, 1, H, W); matches Gauss_filt.forward (replicate pad, 5x5)."""
    n, c, h, w = x.shape
    assert c == 1, "Gauss_filt's (1,1,5,5) kernel with groups=1 requires C == 1"

    hb = _round_up(h, 8)     # sublane-aligned block height
    wb = _round_up(w, 128)   # lane-dense block width

    # TODO(synk): for very large images (whole f32 image approaching VMEM), tile H
    # into row blocks with a 4-row halo instead of one whole image per grid step.
    est = 10 * hb * wb * 4   # in/out double buffers + a few f32 temps
    vmem_limit = max(32 * 1024 * 1024, min(64 * 1024 * 1024, est))

    kern = functools.partial(_gauss_kernel, h=h, w=w)
    return pl.pallas_call(
        kern,
        out_shape=jax.ShapeDtypeStruct((n, 1, h, w), x.dtype),
        grid=(n,),
        in_specs=[pl.BlockSpec((1, 1, hb, wb), lambda i: (i, 0, 0, 0))],
        out_specs=pl.BlockSpec((1, 1, hb, wb), lambda i: (i, 0, 0, 0)),
        compiler_params=pltpu.CompilerParams(
            dimension_semantics=("parallel",),
            vmem_limit_bytes=int(vmem_limit),
        ),
    )(x)


def _reference(x):
    """Pure-JAX reference: replicate pad + 5x5 conv (for the correctness check)."""
    k1 = jnp.asarray(_K1, jnp.float32)
    k2 = jnp.outer(k1, k1)[None, None]  # (1,1,5,5) OIHW
    xp = jnp.pad(x, ((0, 0), (0, 0), (2, 2), (2, 2)), mode="edge")
    return jax.lax.conv_general_dilated(
        xp.astype(jnp.float32), k2, window_strides=(1, 1), padding="VALID",
        dimension_numbers=("NCHW", "OIHW", "NCHW"),
    ).astype(x.dtype)


if __name__ == "__main__":
    key = jax.random.PRNGKey(0)
    x = jax.random.normal(key, (2, 1, 16, 16), dtype=jnp.float32)

    out = jax.block_until_ready(gauss_filt(x))

    ref = _reference(x)
    assert out.shape == (2, 1, 16, 16)
    assert jnp.allclose(out, ref, atol=1e-5, rtol=1e-5), "mismatch vs reference"
    print("KERNEL_OK")
</pallas_src>

<mosaic_0001>
module attributes {stable_mosaic.version = 11 : i64} {
  func.func @_gauss_kernel(%arg0: i32, %arg1: memref<1x1x16x128xf32, #tpu.memory_space<vmem>>, %arg2: memref<1x1x16x128xf32, #tpu.memory_space<vmem>>) attributes {dimension_semantics = [#tpu.dimension_semantics<parallel>], iteration_bounds = array<i64: 2>, scalar_prefetch = 0 : i64, scratch_operands = 0 : i64, tpu.core_type = #tpu.core_type<tc>, window_params = [{transform_indices = @transform_0, window_bounds = array<i64: 1, 1, 16, 128>}, {transform_indices = @transform_1, window_bounds = array<i64: 1, 1, 16, 128>}]} {
    %c0 = arith.constant 0 : index
    %c0_0 = arith.constant 0 : index
    %c0_1 = arith.constant 0 : index
    %c0_2 = arith.constant 0 : index
    %0 = vector.load %arg1[%c0, %c0_0, %c0_1, %c0_2] : memref<1x1x16x128xf32, #tpu.memory_space<vmem>>, vector<1x1x16x128xf32>
    %1 = vector.shape_cast %0 : vector<1x1x16x128xf32> to vector<16x128xf32>
    %c1_i32 = arith.constant 1 : i32
    %2 = tpu.dynamic_rotate %1 by %c1_i32 dim 0 : vector<16x128xf32>, i32 -> vector<16x128xf32>
    %3 = tpu.iota {dimensions = array<i32: 0>} : vector<16x128xi32>
    %c1_i32_3 = arith.constant 1 : i32
    %4 = vector.broadcast %c1_i32_3 : i32 to vector<16x128xi32>
    %5 = arith.cmpi slt, %3, %4 : vector<16x128xi32>
    %6 = vector.extract_strided_slice %1 {offsets = [0, 0], sizes = [1, 128], strides = [1, 1]} : vector<16x128xf32> to vector<1x128xf32>
    %7 = vector.shape_cast %6 : vector<1x128xf32> to vector<1x128xf32>
    %8 = vector.broadcast %7 : vector<1x128xf32> to vector<16x128xf32>
    %9 = arith.select %5, %8, %2 : vector<16x128xi1>, vector<16x128xf32>
    %c15_i32 = arith.constant 15 : i32
    %10 = tpu.dynamic_rotate %1 by %c15_i32 dim 0 : vector<16x128xf32>, i32 -> vector<16x128xf32>
    %11 = tpu.iota {dimensions = array<i32: 0>} : vector<16x128xi32>
    %c15_i32_4 = arith.constant 15 : i32
    %12 = vector.broadcast %c15_i32_4 : i32 to vector<16x128xi32>
    %13 = arith.cmpi sge, %11, %12 : vector<16x128xi32>
    %14 = vector.extract_strided_slice %1 {offsets = [15, 0], sizes = [1, 128], strides = [1, 1]} : vector<16x128xf32> to vector<1x128xf32>
    %15 = vector.shape_cast %14 : vector<1x128xf32> to vector<1x128xf32>
    %16 = vector.broadcast %15 : vector<1x128xf32> to vector<16x128xf32>
    %17 = arith.select %13, %16, %10 : vector<16x128xi1>, vector<16x128xf32>
    %18 = arith.addf %9, %17 : vector<16x128xf32>
    %c2_i32 = arith.constant 2 : i32
    %19 = tpu.dynamic_rotate %1 by %c2_i32 dim 0 : vector<16x128xf32>, i32 -> vector<16x128xf32>
    %20 = tpu.iota {dimensions = array<i32: 0>} : vector<16x128xi32>
    %c2_i32_5 = arith.constant 2 : i32
    %21 = vector.broadcast %c2_i32_5 : i32 to vector<16x128xi32>
    %22 = arith.cmpi slt, %20, %21 : vector<16x128xi32>
    %23 = vector.extract_strided_slice %1 {offsets = [0, 0], sizes = [1, 128], strides = [1, 1]} : vector<16x128xf32> to vector<1x128xf32>
    %24 = vector.shape_cast %23 : vector<1x128xf32> to vector<1x128xf32>
    %25 = vector.broadcast %24 : vector<1x128xf32> to vector<16x128xf32>
    %26 = arith.select %22, %25, %19 : vector<16x128xi1>, vector<16x128xf32>
    %c14_i32 = arith.constant 14 : i32
    %27 = tpu.dynamic_rotate %1 by %c14_i32 dim 0 : vector<16x128xf32>, i32 -> vector<16x128xf32>
    %28 = tpu.iota {dimensions = array<i32: 0>} : vector<16x128xi32>
    %c14_i32_6 = arith.constant 14 : i32
    %29 = vector.broadcast %c14_i32_6 : i32 to vector<16x128xi32>
    %30 = arith.cmpi sge, %28, %29 : vector<16x128xi32>
    %31 = vector.extract_strided_slice %1 {offsets = [15, 0], sizes = [1, 128], strides = [1, 1]} : vector<16x128xf32> to vector<1x128xf32>
    %32 = vector.shape_cast %31 : vector<1x128xf32> to vector<1x128xf32>
    %33 = vector.broadcast %32 : vector<1x128xf32> to vector<16x128xf32>
    %34 = arith.select %30, %33, %27 : vector<16x128xi1>, vector<16x128xf32>
    %35 = arith.addf %26, %34 : vector<16x128xf32>
    %cst = arith.constant 4.000000e-01 : f32
    %36 = vector.broadcast %cst : f32 to vector<16x128xf32>
    %37 = arith.mulf %36, %1 : vector<16x128xf32>
    %cst_7 = arith.constant 2.500000e-01 : f32
    %38 = vector.broadcast %cst_7 : f32 to vector<16x128xf32>
    %39 = arith.mulf %38, %18 : vector<16x128xf32>
    %cst_8 = arith.constant 5.000000e-02 : f32
    %40 = vector.broadcast %cst_8 : f32 to vector<16x128xf32>
    %41 = arith.mulf %40, %35 : vector<16x128xf32>
    %42 = arith.addf %39, %41 : vector<16x128xf32>
    %43 = arith.addf %37, %42 : vector<16x128xf32>
    %c1_i32_9 = arith.constant 1 : i32
    %44 = tpu.dynamic_rotate %43 by %c1_i32_9 dim 1 : vector<16x128xf32>, i32 -> vector<16x128xf32>
    %45 = tpu.iota {dimensions = array<i32: 1>} : vector<16x128xi32>
    %c1_i32_10 = arith.constant 1 : i32
    %46 = vector.broadcast %c1_i32_10 : i32 to vector<16x128xi32>
    %47 = arith.cmpi slt, %45, %46 : vector<16x128xi32>
    %48 = vector.extract_strided_slice %43 {offsets = [0, 0], sizes = [16, 1], strides = [1, 1]} : vector<16x128xf32> to vector<16x1xf32>
    %49 = vector.shape_cast %48 : vector<16x1xf32> to vector<16x1xf32>
    %50 = vector.broadcast %49 : vector<16x1xf32> to vector<16x128xf32>
    %51 = arith.select %47, %50, %44 : vector<16x128xi1>, vector<16x128xf32>
    %c127_i32 = arith.constant 127 : i32
    %52 = tpu.dynamic_rotate %43 by %c127_i32 dim 1 : vector<16x128xf32>, i32 -> vector<16x128xf32>
    %53 = tpu.iota {dimensions = array<i32: 1>} : vector<16x128xi32>
    %c15_i32_11 = arith.constant 15 : i32
    %54 = vector.broadcast %c15_i32_11 : i32 to vector<16x128xi32>
    %55 = arith.cmpi sge, %53, %54 : vector<16x128xi32>
    %56 = vector.extract_strided_slice %43 {offsets = [0, 15], sizes = [16, 1], strides = [1, 1]} : vector<16x128xf32> to vector<16x1xf32>
    %57 = vector.shape_cast %56 : vector<16x1xf32> to vector<16x1xf32>
    %58 = vector.broadcast %57 : vector<16x1xf32> to vector<16x128xf32>
    %59 = arith.select %55, %58, %52 : vector<16x128xi1>, vector<16x128xf32>
    %60 = arith.addf %51, %59 : vector<16x128xf32>
    %c2_i32_12 = arith.constant 2 : i32
    %61 = tpu.dynamic_rotate %43 by %c2_i32_12 dim 1 : vector<16x128xf32>, i32 -> vector<16x128xf32>
    %62 = tpu.iota {dimensions = array<i32: 1>} : vector<16x128xi32>
    %c2_i32_13 = arith.constant 2 : i32
    %63 = vector.broadcast %c2_i32_13 : i32 to vector<16x128xi32>
    %64 = arith.cmpi slt, %62, %63 : vector<16x128xi32>
    %65 = vector.extract_strided_slice %43 {offsets = [0, 0], sizes = [16, 1], strides = [1, 1]} : vector<16x128xf32> to vector<16x1xf32>
    %66 = vector.shape_cast %65 : vector<16x1xf32> to vector<16x1xf32>
    %67 = vector.broadcast %66 : vector<16x1xf32> to vector<16x128xf32>
    %68 = arith.select %64, %67, %61 : vector<16x128xi1>, vector<16x128xf32>
    %c126_i32 = arith.constant 126 : i32
    %69 = tpu.dynamic_rotate %43 by %c126_i32 dim 1 : vector<16x128xf32>, i32 -> vector<16x128xf32>
    %70 = tpu.iota {dimensions = array<i32: 1>} : vector<16x128xi32>
    %c14_i32_14 = arith.constant 14 : i32
    %71 = vector.broadcast %c14_i32_14 : i32 to vector<16x128xi32>
    %72 = arith.cmpi sge, %70, %71 : vector<16x128xi32>
    %73 = vector.extract_strided_slice %43 {offsets = [0, 15], sizes = [16, 1], strides = [1, 1]} : vector<16x128xf32> to vector<16x1xf32>
    %74 = vector.shape_cast %73 : vector<16x1xf32> to vector<16x1xf32>
    %75 = vector.broadcast %74 : vector<16x1xf32> to vector<16x128xf32>
    %76 = arith.select %72, %75, %69 : vector<16x128xi1>, vector<16x128xf32>
    %77 = arith.addf %68, %76 : vector<16x128xf32>
    %cst_15 = arith.constant 4.000000e-01 : f32
    %78 = vector.broadcast %cst_15 : f32 to vector<16x128xf32>
    %79 = arith.mulf %78, %43 : vector<16x128xf32>
    %cst_16 = arith.constant 2.500000e-01 : f32
    %80 = vector.broadcast %cst_16 : f32 to vector<16x128xf32>
    %81 = arith.mulf %80, %60 : vector<16x128xf32>
    %cst_17 = arith.constant 5.000000e-02 : f32
    %82 = vector.broadcast %cst_17 : f32 to vector<16x128xf32>
    %83 = arith.mulf %82, %77 : vector<16x128xf32>
    %84 = arith.addf %81, %83 : vector<16x128xf32>
    %85 = arith.addf %79, %84 : vector<16x128xf32>
    %c0_18 = arith.constant 0 : index
    %c0_19 = arith.constant 0 : index
    %c0_20 = arith.constant 0 : index
    %c0_21 = arith.constant 0 : index
    %86 = vector.load %arg2[%c0_18, %c0_19, %c0_20, %c0_21] : memref<1x1x16x128xf32, #tpu.memory_space<vmem>>, vector<1x1x16x128xf32>
    %87 = vector.shape_cast %86 : vector<1x1x16x128xf32> to vector<16x128xf32>
    %88 = vector.shape_cast %85 : vector<16x128xf32> to vector<1x1x16x128xf32>
    tpu.vector_store %arg2[%c0_18, %c0_19, %c0_20, %c0_21], %88 {strides = array<i32>} : memref<1x1x16x128xf32, #tpu.memory_space<vmem>>, vector<1x1x16x128xf32>,
    return
  }
  func.func @transform_0(%arg0: i32) -> (i32, i32, i32, i32) {
    %c0_i32 = arith.constant 0 : i32
    %c0_i32_0 = arith.constant 0 : i32
    %c0_i32_1 = arith.constant 0 : i32
    %c0_i32_2 = arith.constant 0 : i32
    return %arg0, %c0_i32, %c0_i32_0, %c0_i32_1 : i32, i32, i32, i32
  }
  func.func @transform_1(%arg0: i32) -> (i32, i32, i32, i32) {
    %c0_i32 = arith.constant 0 : i32
    %c0_i32_0 = arith.constant 0 : i32
    %c0_i32_1 = arith.constant 0 : i32
    %c0_i32_2 = arith.constant 0 : i32
    return %arg0, %c0_i32, %c0_i32_0, %c0_i32_1 : i32, i32, i32, i32
  }
}

</mosaic_0001>

<llo_original>
// kernel: tpu_custom_call.1
$region0: #{tpu_custom_call.1}
  #allocation0 [shape = 'u32[]', space=smem, size = 0x4, offset = 0x4, fixed_abs, tag = 'smem constant byte address 0x4 - core index']
  #allocation1 [shape = 'u32[144,128]{1,0:T(1,128)}', space=vmem, size = 0x12000, scoped, tag = 'internal scratch']
  %s0 = inlined_call_operand.hbm [shape: f32[2,1,16,16], index: 0, kind: input, shape index: {}]
  %s1 = inlined_call_operand.hbm [shape: f32[2,1,16,16], index: 1, kind: output, shape index: {}]
  %s2 = sld [smem:[#allocation0]]
  $region41: #{tpu_custom_call.1} parent=0
    _
  %s4 = ssub.s32 1, %s2
  %s5 = scalar_select 0, %s4, %s2
  $region1: #{tpu_custom_call.1} parent=0
    #allocation2 [shape = 'u8[16384]{0}', space=vmem, size = 0x4000, scoped, tag = 'input window, operand 0']
    #allocation3 [shape = 's32[2]{0}', space=sflag, size = 0x8, scoped, tag = 'scoped memory for tpu_custom_call.1']
    #allocation4 [shape = 's32[2]{0}', space=sflag, size = 0x8, scoped, tag = 'scoped memory for tpu_custom_call.1']
    #allocation5 [shape = 'u8[16384]{0}', space=vmem, size = 0x4000, scoped, tag = 'output window, operand 0']
    %6 = vsyncpa [#allocation3], 0
    %s7 = scalar_lea.sflag [#allocation3], 1
    %8 = vsyncpa %s7, 0
    %9 = vsyncpa [#allocation4], 0
    %s10 = scalar_lea.sflag [#allocation4], 1
    %11 = vsyncpa %s10, 0
    loop: start=0, step=1, limit=4
    $region2: #{tpu_custom_call.1} parent=1 // loop_pre_header
      _
    $region3: #{tpu_custom_call.1} parent=1 // loop_header
      %s13 = sphi 0, %s17
      %p14 = scmp.ge.s32.totalorder %s13, 4
      %s23 = sphi 0, %s25
      %s26 = sphi 0, %s23
      %s27 = sphi 0, %s26
      %s43 = sphi 0, %s27
      %s49 = sphi 0, %s51
      %s52 = sphi 0, %s49
      %s53 = sphi 0, %s52
      %s69 = sphi 0, %s53
    $region4: #{tpu_custom_call.1} parent=1 // loop_header_branch
      %16 = sbr.rel (%p14) target = $region8
    $region5: #{tpu_custom_call.1} parent=1 // loop_body
      %s18 = ssub.s32 %s13, 1
      %s19 = ssub.s32 %s13, 2
      %s20 = sadd.s32 %s13, 1
      %s21 = ssub.s32 %s13, %s20
      %p22 = scmp.eq.s32.totalorder %s21, 0
      %s24 = sadd.s32 %s23, 1
      %s25 = scalar_select %p22, %s23, %s24
      %p28 = pneg %p22
      %p29 = scmp.eq.s32.totalorder %s13, 1
      %p30 = por %p28, %p29
      %p31 = scmp.ne.s32.totalorder %s23, %s26
      %p32 = scmp.eq.s32.totalorder %s13, 0
      %p33 = por %p31, %p32
      %p34 = scmp.ne.s32.totalorder %s23, %s26
      %p35 = scmp.eq.s32.totalorder %s18, 1
      %p36 = por %p34, %p35
      %p37 = scmp.ne.s32.totalorder %s26, %s27
      %p38 = scmp.eq.s32.totalorder %s18, 0
      %p39 = por %p37, %p38
      %p40 = scmp.ne.s32.totalorder %s26, %s27
      %p41 = scmp.eq.s32.totalorder %s19, 1
      %p42 = por %p40, %p41
      %p44 = scmp.ne.s32.totalorder %s27, %s43
      %p45 = scmp.eq.s32.totalorder %s19, 0
      %p46 = por %p44, %p45
      %s47 = ssub.s32 %s13, %s20
      %p48 = scmp.eq.s32.totalorder %s47, 0
      %s50 = sadd.s32 %s49, 1
      %s51 = scalar_select %p48, %s49, %s50
      %p54 = pneg %p48
      %p55 = scmp.eq.s32.totalorder %s13, 1
      %p56 = por %p54, %p55
      %p57 = scmp.ne.s32.totalorder %s49, %s52
      %p58 = scmp.eq.s32.totalorder %s13, 0
      %p59 = por %p57, %p58
      %p60 = scmp.ne.s32.totalorder %s49, %s52
      %p61 = scmp.eq.s32.totalorder %s18, 1
      %p62 = por %p60, %p61
      %p63 = scmp.ne.s32.totalorder %s52, %s53
      %p64 = scmp.eq.s32.totalorder %s18, 0
      %p65 = por %p63, %p64
      %p66 = scmp.ne.s32.totalorder %s52, %s53
      %p67 = scmp.eq.s32.totalorder %s19, 1
      %p68 = por %p66, %p67
      %p70 = scmp.ne.s32.totalorder %s53, %s69
      %p71 = scmp.eq.s32.totalorder %s19, 0
      %p72 = por %p70, %p71
      %p73 = scmp.le.s32.totalorder 1, %s13
      %p74 = scmp.lt.s32.totalorder %s13, 3
      %p75 = pnand %p73, %p74
      %p76 = pneg %p75
      // Predicated region
      $region9: #{tpu_custom_call.1} parent=5 // pred_check
        _
      $region10: #{tpu_custom_call.1} parent=5 // pred_check_branch
        %78 = sbr.rel (%p75) target = $region12
      $region11: #{tpu_custom_call.1} parent=5 // pred_region
        %s79 = ssub.s32 %s13, 1
      $region12: #{tpu_custom_call.1} parent=5 // pred_fallthru
        _
      %p80 = scmp.lt.s32.totalorder %s13, 2
      // Predicated region
      $region13: #{tpu_custom_call.1} parent=5 // pred_check
        %p81 = pneg %p80
      $region14: #{tpu_custom_call.1} parent=5 // pred_check_branch
        %83 = sbr.rel (%p81) target = $region16
      $region15: #{tpu_custom_call.1} parent=5 // pred_region
        // Predicated region
        $region17: #{tpu_custom_call.1} parent=15 // pred_check
          %p84 = pneg %p33
        $region18: #{tpu_custom_call.1} parent=15 // pred_check_branch
          %86 = sbr.rel (%p84) target = $region20
        $region19: #{tpu_custom_call.1} parent=15 // pred_region
          %s87 = sand.u32 %s23, 1
          %s88 = scalar_lea.sflag [#allocation3], %s87
          %s89 = sand.u32 %s23, 1
          %s90 = smul.addr %s89, 16
          %s91 = scalar_lea.vmem [#allocation2], %s90
          %s93 = ssub.s32 256, 256
          %94 = vsyncadd %s88, %s93
          %s95 = smul.addr %s13, 2
          %s96 = smul.addr %s95, 128
          %s97 = scalar_lea.hbm %s0, %s96
          %s98 = sshll.u32 %s91, 4
          %s99 = int_to_ptr.vmem [resolvable:$true] %s98
          %104 = dma.hbm_to_vmem [thread:$0]  %s97, 256, %s99, %s88, 128, 128, 8
        $region20: #{tpu_custom_call.1} parent=15 // pred_fallthru
          _
      $region16: #{tpu_custom_call.1} parent=5 // pred_fallthru
        _
      %p105 = scmp.le.s32.totalorder 1, %s13
      %p106 = scmp.lt.s32.totalorder %s13, 3
      %p107 = pnand %p105, %p106
      %p108 = pneg %p107
      // Predicated region
      $region21: #{tpu_custom_call.1} parent=5 // pred_check
        _
      $region22: #{tpu_custom_call.1} parent=5 // pred_check_branch
        %110 = sbr.rel (%p107) target = $region24
      $region23: #{tpu_custom_call.1} parent=5 // pred_region
        %s111 = ssub.s32 %s13, 1
        %s112 = sand.u32 %s26, 1
        %s113 = scalar_lea.sflag [#allocation3], %s112
        %s114 = sand.u32 %s26, 1
        %s115 = smul.addr %s114, 16
        %s116 = scalar_lea.vmem [#allocation2], %s115
        // Predicated region
        $region25: #{tpu_custom_call.1} parent=23 // pred_check
          %p117 = pneg %p39
        $region26: #{tpu_custom_call.1} parent=23 // pred_check_branch
          %119 = sbr.rel (%p117) target = $region28
        $region27: #{tpu_custom_call.1} parent=23 // pred_region
          %120 = dma.done %s113, 256
        $region28: #{tpu_custom_call.1} parent=23 // pred_fallthru
          _
        %s121 = sand.u32 %s26, 1
        %s122 = scalar_lea.sflag [#allocation3], %s121
        %s123 = sand.u32 %s26, 1
        %s124 = smul.addr %s123, 16
        %s125 = scalar_lea.vmem [#allocation2], %s124
        %p126 = pneg %p39
        %p127 = pneg %p36
        %p128 = pneg %p65
        %p129 = pneg %p62
        %s130 = sand.u32 %s52, 1
        %s131 = scalar_lea.sflag [#allocation4], %s130
        %s132 = sand.u32 %s52, 1
        %s133 = smul.addr %s132, 16
        %s134 = scalar_lea.vmem [#allocation5], %s133
        %v135 = vld [vmem:[%s116] sm:$0xff]
        %v136 = vld [vmem:[%s116 + $0x8] sm:$0xff]
        %v137 = vrot.slane %v135, 7
        %v138 = vrot.slane %v136, 7
        %v139 = vlaneseq
        %v140 = vshrl.u32 %v139, 7
        %vm141 = vcmp.lt.s32.totalorder %v140, 1
        %v142 = vsel %vm141, %v137, %v138
        %v143 = vsel %vm141, %v138, %v137
        %v144 = vadd.s32 %v140, 8
        %vm145 = vcmp.lt.s32.totalorder %v144, 1
        %v146 = vlaneseq
        %v147 = vshrl.u32 %v146, 7
        %v148 = vsub.s32 0, %v147
        %v149 = vrot.slane %v135, %v148
        %v150 = vsel %vm141, %v149, %v143
        %v151 = vsel %vm145, %v149, %v142
        %v152 = vrot.slane %v135, 1
        %v153 = vrot.slane %v136, 1
        %vm154 = vcmp.lt.s32.totalorder %v140, 7
        %v155 = vsel %vm154, %v152, %v153
        %v156 = vsel %vm154, %v153, %v152
        %vm157 = vcmp.ge.s32.totalorder %v140, 15
        %vm158 = vcmp.ge.s32.totalorder %v144, 15
        %v159 = vlaneseq
        %v160 = vshrl.u32 %v159, 7
        %v161 = vsub.s32 7, %v160
        %v162 = vrot.slane %v136, %v161
        %v163 = vsel %vm157, %v162, %v155
        %v164 = vsel %vm158, %v162, %v156
        %v165 = vadd.f32 %v150, %v163
        %v166 = vadd.f32 %v151, %v164
        %v167 = vrot.slane %v135, 6
        %v168 = vrot.slane %v136, 6
        %vm169 = vcmp.lt.s32.totalorder %v140, 2
        %v170 = vsel %vm169, %v167, %v168
        %v171 = vsel %vm169, %v168, %v167
        %vm172 = vcmp.lt.s32.totalorder %v144, 2
        %v173 = vsel %vm169, %v149, %v171
        %v174 = vsel %vm172, %v149, %v170
        %v175 = vrot.slane %v135, 2
        %v176 = vrot.slane %v136, 2
        %vm177 = vcmp.lt.s32.totalorder %v140, 6
        %v178 = vsel %vm177, %v175, %v176
        %v179 = vsel %vm177, %v176, %v175
        %vm180 = vcmp.ge.s32.totalorder %v140, 14
        %vm181 = vcmp.ge.s32.totalorder %v144, 14
        %v182 = vsel %vm180, %v162, %v178
        %v183 = vsel %vm181, %v162, %v179
        %v184 = vadd.f32 %v173, %v182
        %v185 = vadd.f32 %v174, %v183
        %v186 = vmul.f32 %v135, 0.4
        %v187 = vmul.f32 %v136, 0.4
        %v188 = vmul.f32 %v165, 0.25
        %v189 = vmul.f32 %v166, 0.25
        %v190 = vmul.f32 %v184, 0.05
        %v191 = vmul.f32 %v185, 0.05
        %v192 = vadd.f32 %v188, %v190
        %v193 = vadd.f32 %v189, %v191
        %v194 = vadd.f32 %v186, %v192
        %v195 = vadd.f32 %v187, %v193
        %196 = vrot.lane.b32.xlu0 %v194, 1
        %v197 = vpop.permute.xlu0 %196
        %198 = vrot.lane.b32.xlu0 %v195, 1
        %v199 = vpop.permute.xlu0 %198
        %v200 = vlaneseq
        %v201 = vand.u32 %v200, 127
        %vm202 = vcmp.lt.s32.totalorder %v201, 1
        %204 = vset.pattern.permute.xlu0 0
        %205 = vperm.xlu0 %204, %v194
        %v206 = vpop.permute.xlu0 %205
        %209 = vset.pattern.permute.xlu0 0
        %210 = vperm.xlu0 %209, %v195
        %v211 = vpop.permute.xlu0 %210
        %v213 = vsel %vm202, %v206, %v197
        %v214 = vsel %vm202, %v211, %v199
        %215 = vrot.lane.b32.xlu0 %v194, 127
        %v216 = vpop.permute.xlu0 %215
        %217 = vrot.lane.b32.xlu0 %v195, 127
        %v218 = vpop.permute.xlu0 %217
        %vm219 = vcmp.ge.s32.totalorder %v201, 15
        %220 = vset.pattern.permute.xlu0 15
        %221 = vperm.xlu0 %220, %v194
        %v222 = vpop.permute.xlu0 %221
        %224 = vset.pattern.permute.xlu0 15
        %225 = vperm.xlu0 %224, %v195
        %v226 = vpop.permute.xlu0 %225
        %v228 = vsel %vm219, %v222, %v216
        %v229 = vsel %vm219, %v226, %v218
        %v230 = vadd.f32 %v213, %v228
        %v231 = vadd.f32 %v214, %v229
        %232 = vrot.lane.b32.xlu0 %v194, 2
        %v233 = vpop.permute.xlu0 %232
        %234 = vrot.lane.b32.xlu0 %v195, 2
        %v235 = vpop.permute.xlu0 %234
        %vm236 = vcmp.lt.s32.totalorder %v201, 2
        %v237 = vsel %vm236, %v206, %v233
        %v238 = vsel %vm236, %v211, %v235
        %239 = vrot.lane.b32.xlu0 %v194, 126
        %v240 = vpop.permute.xlu0 %239
        %241 = vrot.lane.b32.xlu0 %v195, 126
        %v242 = vpop.permute.xlu0 %241
        %vm243 = vcmp.ge.s32.totalorder %v201, 14
        %v244 = vsel %vm243, %v222, %v240
        %v245 = vsel %vm243, %v226, %v242
        %v246 = vadd.f32 %v237, %v244
        %v247 = vadd.f32 %v238, %v245
        %v248 = vmul.f32 %v194, 0.4
        %v249 = vmul.f32 %v195, 0.4
        %v250 = vmul.f32 %v230, 0.25
        %v251 = vmul.f32 %v231, 0.25
        %v252 = vmul.f32 %v246, 0.05
        %v253 = vmul.f32 %v247, 0.05
        %v254 = vadd.f32 %v250, %v252
        %v255 = vadd.f32 %v251, %v253
        %v256 = vadd.f32 %v248, %v254
        %v257 = vadd.f32 %v249, %v255
        %258 = vst [vmem:[%s134] sm:$0xff] %v256
        %259 = vst [vmem:[%s134 + $0x8] sm:$0xff] %v257
        %s260 = sand.u32 %s52, 1
        %s261 = scalar_lea.sflag [#allocation4], %s260
        %s262 = sand.u32 %s52, 1
        %s263 = smul.addr %s262, 16
        %s264 = scalar_lea.vmem [#allocation5], %s263
        // Predicated region
        $region29: #{tpu_custom_call.1} parent=23 // pred_check
          %p265 = pneg %p62
        $region30: #{tpu_custom_call.1} parent=23 // pred_check_branch
          %267 = sbr.rel (%p265) target = $region32
        $region31: #{tpu_custom_call.1} parent=23 // pred_region
          %s269 = ssub.s32 256, 256
          %270 = vsyncadd %s261, %s269
          %s271 = smul.addr %s18, 2
          %s272 = smul.addr %s271, 128
          %s273 = scalar_lea.hbm %s1, %s272
          %s274 = sshll.u32 %s264, 4
          %s275 = int_to_ptr.vmem [resolvable:$true] %s274
          %280 = dma.vmem_to_hbm [thread:$0]  %s275, 256, %s273, %s261, 128, 128, 8
        $region32: #{tpu_custom_call.1} parent=23 // pred_fallthru
          _
      $region24: #{tpu_custom_call.1} parent=5 // pred_fallthru
        _
      %p281 = scmp.le.s32.totalorder 2, %s13
      // Predicated region
      $region33: #{tpu_custom_call.1} parent=5 // pred_check
        %p282 = pneg %p281
      $region34: #{tpu_custom_call.1} parent=5 // pred_check_branch
        %284 = sbr.rel (%p282) target = $region36
      $region35: #{tpu_custom_call.1} parent=5 // pred_region
        %s285 = ssub.s32 %s13, 2
        // Predicated region
        $region37: #{tpu_custom_call.1} parent=35 // pred_check
          %p286 = pneg %p68
        $region38: #{tpu_custom_call.1} parent=35 // pred_check_branch
          %288 = sbr.rel (%p286) target = $region40
        $region39: #{tpu_custom_call.1} parent=35 // pred_region
          %s289 = sand.u32 %s53, 1
          %s290 = scalar_lea.sflag [#allocation4], %s289
          %s291 = sand.u32 %s53, 1
          %s292 = smul.addr %s291, 16
          %s293 = scalar_lea.vmem [#allocation5], %s292
          %294 = dma.done %s290, 256
        $region40: #{tpu_custom_call.1} parent=35 // pred_fallthru
          _
      $region36: #{tpu_custom_call.1} parent=5 // pred_fallthru
        _
    $region6: #{tpu_custom_call.1} parent=1 // loop_footer
      %s17 = sadd.s32 1, %s13
    $region7: #{tpu_custom_call.1} parent=1 // loop_footer_branch
      %12 = sbr.rel target = $region3
    $region8: #{tpu_custom_call.1} parent=1 // loop_exit
      _
    %295 = vsyncpa [#allocation3], 1
    %s296 = scalar_lea.sflag [#allocation3], 1
    %297 = vsyncpa %s296, 1
    %298 = vsyncpa [#allocation4], 1
    %s299 = scalar_lea.sflag [#allocation4], 1
    %300 = vsyncpa %s299, 1

</llo_original>
